<compile_context>
chip_gen: v7x
topology: tpu7x:2x2x1
jax: 0.10.0
libtpu: 0.0.40
codegen_flags: <defaults>
</compile_context>

<pallas_src>
import functools

import jax
import jax.numpy as jnp
from jax.experimental import pallas as pl
from jax.experimental.pallas import tpu as pltpu


def _round_up(x, m):
    return ((x + m - 1) // m) * m


def _nn_kernel(x_ref, wcat_ref, bcat_ref, w2_ref, b2_ref, out_ref, *,
               control_min, control_max, ctrl_col, n_output):
    """One batch tile of the fused Lyapunov / control network.

    z    = clamp(x) @ [W1.T | wc.T | 0] + [b1 | 0]     (single MXU matmul, width Z)
    pre  = z with ONLY the ctrl lane clamped
    act  = tanh(pre)        -> hidden activations (lanes 0:nh), control (lane ctrl_col)
    lyap = tanh(act @ W2_pad + b2_pad)                  (narrow (TB, 8) matmul)
    out  = lyap with lane n_output replaced by act[:, ctrl_col]
    """
    cx = jnp.clip(x_ref[...], control_min, control_max)

    z = jnp.dot(cx, wcat_ref[...], preferred_element_type=jnp.float32) + bcat_ref[...]

    # Clip only the control lane, then one shared tanh over the slab.
    z_lane = jax.lax.broadcasted_iota(jnp.int32, (1, z.shape[1]), 1)
    pre = jnp.where(z_lane == ctrl_col, jnp.clip(z, control_min, control_max), z)
    act = jnp.tanh(pre)

    # Second layer: narrow (Z, 8) weight; ctrl row is zero so the clipped lane
    # cannot pollute the Lyapunov candidate.
    lyap = jnp.tanh(
        jnp.dot(act, w2_ref[...], preferred_element_type=jnp.float32) + b2_ref[...]
    )

    ctrl = act[:, ctrl_col:ctrl_col + 1]                       # (TB, 1)

    out_lane = jax.lax.broadcasted_iota(jnp.int32, (1, out_ref.shape[1]), 1)
    out_ref[...] = jnp.where(out_lane == n_output, ctrl, lyap).astype(out_ref.dtype)


def prepare_params(w1, b1, w2, b2, wc):
    """One-time parameter preparation (transpose + zero-pad to TPU tiles).

    Args (PyTorch Linear layouts):
      w1: (n_hidden, n_input), b1: (n_hidden,)
      w2: (n_output, n_hidden), b2: (n_output,)
      wc: (1, n_input)   -- initial_control, no bias
    """
    w1 = jnp.asarray(w1, jnp.float32)
    b1 = jnp.asarray(b1, jnp.float32)
    w2 = jnp.asarray(w2, jnp.float32)
    b2 = jnp.asarray(b2, jnp.float32)
    wc = jnp.asarray(wc, jnp.float32)

    n_hidden, n_input = w1.shape
    n_output = w2.shape[0]

    ctrl_col = n_hidden                               # ctrl lane inside the z slab
    z_w = _round_up(n_hidden + 1, 128)                # lane-aligned hidden+ctrl width
    out_w = _round_up(n_output + 1, 8)                # narrow output slab width

    # Fused first-layer + control weight: (n_input, z_w).  No K padding of x.
    w_cat = jnp.zeros((n_input, z_w), jnp.float32)
    w_cat = w_cat.at[:, :n_hidden].set(w1.T)
    w_cat = w_cat.at[:, ctrl_col].set(wc.reshape(-1))
    b_cat = jnp.zeros((1, z_w), jnp.float32).at[0, :n_hidden].set(b1)

    # Narrow second layer: (z_w, out_w); zero rows kill ctrl/garbage lanes.
    w2_pad = jnp.zeros((z_w, out_w), jnp.float32).at[:n_hidden, :n_output].set(w2.T)
    b2_pad = jnp.zeros((1, out_w), jnp.float32).at[0, :n_output].set(b2)

    return {
        "w_cat": w_cat, "b_cat": b_cat, "w2_pad": w2_pad, "b2_pad": b2_pad,
        "n_input": n_input, "n_hidden": n_hidden, "n_output": n_output,
        "ctrl_col": ctrl_col, "z_w": z_w, "out_w": out_w,
    }


def make_forward_fn(prepared, *, control_min, control_max, block_b=2048,
                    min_split_rows=128):
    """Build a jitted forward: x (B, n_input) -> (lyapunov (B, n_output), control (B, 1))."""
    w_cat = prepared["w_cat"]
    b_cat = prepared["b_cat"]
    w2_pad = prepared["w2_pad"]
    b2_pad = prepared["b2_pad"]
    n_input = prepared["n_input"]
    n_output = prepared["n_output"]
    ctrl_col = prepared["ctrl_col"]
    z_w = prepared["z_w"]
    out_w = prepared["out_w"]

    kernel = functools.partial(
        _nn_kernel,
        control_min=float(control_min),
        control_max=float(control_max),
        ctrl_col=ctrl_col,
        n_output=n_output,
    )

    @jax.jit
    def forward(x):
        b = x.shape[0]
        b8 = _round_up(b, 8)

        # Derive the batch tile: minimize padding waste, and for large batches
        # force >= 2 grid steps so v7x's two TensorCores both get work.
        n_tiles = max(1, -(-b8 // block_b))
        if n_tiles == 1 and b8 >= 2 * min_split_rows:
            n_tiles = 2
        tb = _round_up(-(-b8 // n_tiles), 8)
        b_pad = _round_up(b8, tb)

        x32 = x.astype(jnp.float32)
        if b_pad != b:
            x32 = jnp.zeros((b_pad, n_input), jnp.float32).at[:b, :].set(x32)

        out = pl.pallas_call(
            kernel,
            out_shape=jax.ShapeDtypeStruct((b_pad, out_w), jnp.float32),
            grid=(b_pad // tb,),
            in_specs=[
                pl.BlockSpec((tb, n_input), lambda i: (i, 0)),   # x: tiled over batch
                pl.BlockSpec((n_input, z_w), lambda i: (0, 0)),  # fused W1|wc (VMEM-resident)
                pl.BlockSpec((1, z_w), lambda i: (0, 0)),        # fused bias
                pl.BlockSpec((z_w, out_w), lambda i: (0, 0)),    # narrow padded W2
                pl.BlockSpec((1, out_w), lambda i: (0, 0)),      # narrow padded b2
            ],
            out_specs=pl.BlockSpec((tb, out_w), lambda i: (i, 0)),  # narrow output slab
            compiler_params=pltpu.CompilerParams(
                dimension_semantics=("parallel",),               # megacore split on v7x
            ),
        )(x32, w_cat, b_cat, w2_pad, b2_pad)

        lyapunov_candidate = out[:b, :n_output]
        control_function = out[:b, n_output:n_output + 1]
        return lyapunov_candidate, control_function

    return forward


def _reference_forward(x, w1, b1, w2, b2, wc, *, control_min, control_max):
    """Pure-JAX reference mirroring the PyTorch forward."""
    cx = jnp.clip(x, control_min, control_max)
    h = jnp.tanh(cx @ w1.T + b1)
    lyap = jnp.tanh(h @ w2.T + b2)
    u = jnp.clip(cx @ wc.T, control_min, control_max)
    return lyap, jnp.tanh(u)


# TODO(synk): `derivative` and `umax` are standalone helper methods (not part of
# forward) and are left to plain JAX if ever needed.

if __name__ == "__main__":
    batch = 8
    n_input = 4
    n_hidden = 32
    n_output = 2
    control_min = -1.0
    control_max = 1.0

    key = jax.random.PRNGKey(0)
    kx, k1, kb1, k2, kb2, kc = jax.random.split(key, 6)

    x = jax.random.normal(kx, (batch, n_input), dtype=jnp.float32) * 2.0
    w1 = jax.random.normal(k1, (n_hidden, n_input), dtype=jnp.float32) * 0.3
    b1 = jax.random.normal(kb1, (n_hidden,), dtype=jnp.float32) * 0.1
    w2 = jax.random.normal(k2, (n_output, n_hidden), dtype=jnp.float32) * 0.3
    b2 = jax.random.normal(kb2, (n_output,), dtype=jnp.float32) * 0.1
    wc = jax.random.normal(kc, (1, n_input), dtype=jnp.float32) * 0.5

    # One-time parameter prep (hoisted out of the per-call path).
    prepared = prepare_params(w1, b1, w2, b2, wc)
    forward = make_forward_fn(
        prepared, control_min=control_min, control_max=control_max
    )

    lyap, ctrl = forward(x)
    jax.block_until_ready((lyap, ctrl))

    lyap_ref, ctrl_ref = _reference_forward(
        x, w1, b1, w2, b2, wc, control_min=control_min, control_max=control_max
    )

    assert lyap.shape == (batch, n_output)
    assert ctrl.shape == (batch, 1)
    assert jnp.allclose(lyap, lyap_ref, atol=1e-5, rtol=1e-5)
    assert jnp.allclose(ctrl, ctrl_ref, atol=1e-5, rtol=1e-5)

    print("KERNEL_OK")
</pallas_src>

<mosaic_0001>
module attributes {stable_mosaic.version = 11 : i64} {
  func.func @_nn_kernel(%arg0: i32, %arg1: memref<8x4xf32, #tpu.memory_space<vmem>>, %arg2: memref<4x128xf32, #tpu.memory_space<vmem>>, %arg3: memref<1x128xf32, #tpu.memory_space<vmem>>, %arg4: memref<128x8xf32, #tpu.memory_space<vmem>>, %arg5: memref<1x8xf32, #tpu.memory_space<vmem>>, %arg6: memref<8x8xf32, #tpu.memory_space<vmem>>) attributes {dimension_semantics = [#tpu.dimension_semantics<parallel>], iteration_bounds = array<i64: 1>, scalar_prefetch = 0 : i64, scratch_operands = 0 : i64, tpu.core_type = #tpu.core_type<tc>, window_params = [{transform_indices = @transform_0, window_bounds = array<i64: 8, 4>}, {pipeline_mode = #tpu.pipeline_mode<synchronous>, transform_indices = @transform_1, window_bounds = array<i64: 4, 128>}, {pipeline_mode = #tpu.pipeline_mode<synchronous>, transform_indices = @transform_2, window_bounds = array<i64: 1, 128>}, {pipeline_mode = #tpu.pipeline_mode<synchronous>, transform_indices = @transform_3, window_bounds = array<i64: 128, 8>}, {pipeline_mode = #tpu.pipeline_mode<synchronous>, transform_indices = @transform_4, window_bounds = array<i64: 1, 8>}, {transform_indices = @transform_5, window_bounds = array<i64: 8, 8>}]} {
    %c0 = arith.constant 0 : index
    %c0_0 = arith.constant 0 : index
    %0 = vector.load %arg1[%c0, %c0_0] : memref<8x4xf32, #tpu.memory_space<vmem>>, vector<8x4xf32>
    %cst = arith.constant -1.000000e+00 : f32
    %cst_1 = arith.constant 1.000000e+00 : f32
    %1 = vector.broadcast %cst : f32 to vector<8x4xf32>
    %2 = arith.maximumf %1, %0 : vector<8x4xf32>
    %3 = vector.broadcast %cst_1 : f32 to vector<8x4xf32>
    %4 = arith.minimumf %3, %2 : vector<8x4xf32>
    %c0_2 = arith.constant 0 : index
    %c0_3 = arith.constant 0 : index
    %5 = vector.load %arg2[%c0_2, %c0_3] : memref<4x128xf32, #tpu.memory_space<vmem>>, vector<4x128xf32>
    %cst_4 = arith.constant dense<0.000000e+00> : vector<8x128xf32>
    %6 = tpu.matmul %4, %5, %cst_4 {dimension_numbers = #tpu.dot_dimension_numbers<[1], [0], [0], [1], [0, 0, 1, 1], [], []>} : vector<8x4xf32>, vector<4x128xf32>, vector<8x128xf32> -> vector<8x128xf32>
    %c0_5 = arith.constant 0 : index
    %c0_6 = arith.constant 0 : index
    %7 = vector.load %arg3[%c0_5, %c0_6] : memref<1x128xf32, #tpu.memory_space<vmem>>, vector<1x128xf32>
    %8 = vector.broadcast %7 : vector<1x128xf32> to vector<8x128xf32>
    %9 = arith.addf %6, %8 : vector<8x128xf32>
    %10 = tpu.iota {dimensions = array<i32: 1>} : vector<1x128xi32>
    %c32_i32 = arith.constant 32 : i32
    %11 = vector.broadcast %c32_i32 : i32 to vector<1x128xi32>
    %12 = arith.cmpi eq, %10, %11 : vector<1x128xi32>
    %cst_7 = arith.constant -1.000000e+00 : f32
    %cst_8 = arith.constant 1.000000e+00 : f32
    %13 = vector.broadcast %cst_7 : f32 to vector<8x128xf32>
    %14 = arith.maximumf %13, %9 : vector<8x128xf32>
    %15 = vector.broadcast %cst_8 : f32 to vector<8x128xf32>
    %16 = arith.minimumf %15, %14 : vector<8x128xf32>
    %17 = vector.shape_cast %12 : vector<1x128xi1> to vector<1x128xi1>
    %18 = vector.broadcast %17 : vector<1x128xi1> to vector<8x128xi1>
    %19 = arith.select %18, %16, %9 : vector<8x128xi1>, vector<8x128xf32>
    %20 = math.tanh %19 : vector<8x128xf32>
    %c0_9 = arith.constant 0 : index
    %c0_10 = arith.constant 0 : index
    %21 = vector.load %arg4[%c0_9, %c0_10] : memref<128x8xf32, #tpu.memory_space<vmem>>, vector<128x8xf32>
    %cst_11 = arith.constant dense<0.000000e+00> : vector<8x8xf32>
    %22 = tpu.matmul %20, %21, %cst_11 {dimension_numbers = #tpu.dot_dimension_numbers<[1], [0], [0], [1], [0, 0, 1, 1], [], []>} : vector<8x128xf32>, vector<128x8xf32>, vector<8x8xf32> -> vector<8x8xf32>
    %c0_12 = arith.constant 0 : index
    %c0_13 = arith.constant 0 : index
    %23 = vector.load %arg5[%c0_12, %c0_13] : memref<1x8xf32, #tpu.memory_space<vmem>>, vector<1x8xf32>
    %24 = vector.broadcast %23 : vector<1x8xf32> to vector<8x8xf32>
    %25 = arith.addf %22, %24 : vector<8x8xf32>
    %26 = math.tanh %25 : vector<8x8xf32>
    %27 = vector.extract_strided_slice %20 {offsets = [0, 32], sizes = [8, 1], strides = [1, 1]} : vector<8x128xf32> to vector<8x1xf32>
    %28 = tpu.iota {dimensions = array<i32: 1>} : vector<1x8xi32>
    %c2_i32 = arith.constant 2 : i32
    %29 = vector.broadcast %c2_i32 : i32 to vector<1x8xi32>
    %30 = arith.cmpi eq, %28, %29 : vector<1x8xi32>
    %31 = vector.shape_cast %30 : vector<1x8xi1> to vector<1x8xi1>
    %32 = vector.broadcast %31 : vector<1x8xi1> to vector<8x8xi1>
    %33 = vector.shape_cast %27 : vector<8x1xf32> to vector<8x1xf32>
    %34 = vector.broadcast %33 : vector<8x1xf32> to vector<8x8xf32>
    %35 = arith.select %32, %34, %26 : vector<8x8xi1>, vector<8x8xf32>
    %c0_14 = arith.constant 0 : index
    %c0_15 = arith.constant 0 : index
    %36 = vector.load %arg6[%c0_14, %c0_15] : memref<8x8xf32, #tpu.memory_space<vmem>>, vector<8x8xf32>
    tpu.vector_store %arg6[%c0_14, %c0_15], %35 {strides = array<i32>} : memref<8x8xf32, #tpu.memory_space<vmem>>, vector<8x8xf32>,
    return
  }
  func.func @transform_0(%arg0: i32) -> (i32, i32) {
    %c0_i32 = arith.constant 0 : i32
    %c0_i32_0 = arith.constant 0 : i32
    return %arg0, %c0_i32 : i32, i32
  }
  func.func @transform_1(%arg0: i32) -> (i32, i32) {
    %c0_i32 = arith.constant 0 : i32
    %c0_i32_0 = arith.constant 0 : i32
    %c0_i32_1 = arith.constant 0 : i32
    return %c0_i32, %c0_i32_0 : i32, i32
  }
  func.func @transform_2(%arg0: i32) -> (i32, i32) {
    %c0_i32 = arith.constant 0 : i32
    %c0_i32_0 = arith.constant 0 : i32
    %c0_i32_1 = arith.constant 0 : i32
    return %c0_i32, %c0_i32_0 : i32, i32
  }
  func.func @transform_3(%arg0: i32) -> (i32, i32) {
    %c0_i32 = arith.constant 0 : i32
    %c0_i32_0 = arith.constant 0 : i32
    %c0_i32_1 = arith.constant 0 : i32
    return %c0_i32, %c0_i32_0 : i32, i32
  }
  func.func @transform_4(%arg0: i32) -> (i32, i32) {
    %c0_i32 = arith.constant 0 : i32
    %c0_i32_0 = arith.constant 0 : i32
    %c0_i32_1 = arith.constant 0 : i32
    return %c0_i32, %c0_i32_0 : i32, i32
  }
  func.func @transform_5(%arg0: i32) -> (i32, i32) {
    %c0_i32 = arith.constant 0 : i32
    %c0_i32_0 = arith.constant 0 : i32
    return %arg0, %c0_i32 : i32, i32
  }
}

</mosaic_0001>

<llo_original>
// kernel: forward.1
$region0: #{forward.1}
  #allocation0 [shape = 'u32[]', space=smem, size = 0x4, offset = 0x4, fixed_abs, tag = 'smem constant byte address 0x4 - core index']
  #allocation1 [shape = 'u32[144,128]{1,0:T(1,128)}', space=vmem, size = 0x12000, scoped, tag = 'internal scratch']
  %s0 = inlined_call_operand.vmem [shape: f32[8,4], index: 0, kind: input, shape index: {}]
  %s1 = inlined_call_operand.vmem [shape: f32[4,128], index: 1, kind: input, shape index: {}]
  %s2 = inlined_call_operand.vmem [shape: f32[1,128], index: 2, kind: input, shape index: {}]
  %s3 = inlined_call_operand.hbm [shape: f32[128,8], index: 3, kind: input, shape index: {}]
  %s4 = inlined_call_operand.vmem [shape: f32[1,8], index: 4, kind: input, shape index: {}]
  %s5 = inlined_call_operand.vmem [shape: f32[8,8], index: 5, kind: output, shape index: {}]
  %s6 = sld [smem:[#allocation0]]
  $region34: #{forward.1} parent=0
    _
  %s8 = ssub.s32 1, %s6
  %s9 = scalar_select 0, %s8, %s6
  $region1: #{forward.1} parent=0
    #allocation2 [shape = 'u8[65536]{0}', space=vmem, size = 0x10000, scoped, tag = 'input window, operand 3, single buffered']
    #allocation3 [shape = 's32[1]{0}', space=sflag, size = 0x4, scoped, tag = 'scoped memory for forward.1']
    %10 = vsyncpa [#allocation3], 0
    // Predicated region
    $region2: #{forward.1} parent=1 // pred_check
      _
    $region3: #{forward.1} parent=1 // pred_check_branch
      %12 = sbr.rel (0) target = $region5
    $region4: #{forward.1} parent=1 // pred_region
      _
    $region5: #{forward.1} parent=1 // pred_fallthru
      _
    // Predicated region
    $region6: #{forward.1} parent=1 // pred_check
      _
    $region7: #{forward.1} parent=1 // pred_check_branch
      %14 = sbr.rel (0) target = $region9
    $region8: #{forward.1} parent=1 // pred_region
      _
    $region9: #{forward.1} parent=1 // pred_fallthru
      _
    // Predicated region
    $region10: #{forward.1} parent=1 // pred_check
      _
    $region11: #{forward.1} parent=1 // pred_check_branch
      %16 = sbr.rel (0) target = $region13
    $region12: #{forward.1} parent=1 // pred_region
      _
    $region13: #{forward.1} parent=1 // pred_fallthru
      _
    // Predicated region
    $region14: #{forward.1} parent=1 // pred_check
      _
    $region15: #{forward.1} parent=1 // pred_check_branch
      %18 = sbr.rel (0) target = $region17
    $region16: #{forward.1} parent=1 // pred_region
      %s20 = ssub.s32 2048, 2048
      %21 = vsyncadd [#allocation3], %s20
      %s22 = sshll.u32 [#allocation2], 4
      %s23 = int_to_ptr.vmem [resolvable:$true] %s22
      %28 = dma.hbm_to_vmem [thread:$0]  %s3, 2048, %s23, [#allocation3], 128, 128, 8
    $region17: #{forward.1} parent=1 // pred_fallthru
      _
    // Predicated region
    $region18: #{forward.1} parent=1 // pred_check
      _
    $region19: #{forward.1} parent=1 // pred_check_branch
      %30 = sbr.rel (0) target = $region21
    $region20: #{forward.1} parent=1 // pred_region
      _
    $region21: #{forward.1} parent=1 // pred_fallthru
      _
    // Predicated region
    $region22: #{forward.1} parent=1 // pred_check
      _
    $region23: #{forward.1} parent=1 // pred_check_branch
      %32 = sbr.rel (0) target = $region25
    $region24: #{forward.1} parent=1 // pred_region
      %33 = dma.done [#allocation3], 2048
    $region25: #{forward.1} parent=1 // pred_fallthru
      _
    %v34 = vld [vmem:[%s0] sm:$0xff]
    %v35 = vmax.f32 %v34, -1.0
    %v36 = vmin.f32 %v35, 1.0
    %v37 = vld [vmem:[%s1] sm:$0xf]
    %v38 = vld [vmem:[%s2] sm:$0x1]
    %v40 = vlaneseq
    %v41 = vshrl.u32 %v40, 7
    %v42 = vsub.s32 0, %v41
    %v43 = vrot.slane %v38, %v42
    %vm45 = vcmask 31744
    %v47 = vsel %vm45, %v36, 0
    %vm49 = vcmask 1043456
    %v51 = vsel %vm49, %v37, 0
    %53 = vmatprep.subr.mxu0 0.0
    %54 = vmatpush1.msra.mxu0 %v51
    %55 = vmatprep.subr.mxu0 0.0
    %56 = vmatpush1.msra.mxu0 0.0
    %57 = vmatprep.subr.mxu0 0.0
    %58 = vmatpush1.msra.mxu0 0.0
    %59 = vmatprep.subr.mxu0 0.0
    %60 = vmatpush1.msra.mxu0 0.0
    %61 = vmatprep.subr.mxu0 0.0
    %62 = vmatpush1.msra.mxu0 0.0
    %63 = vmatprep.subr.mxu0 0.0
    %64 = vmatpush1.msra.mxu0 0.0
    %65 = vmatprep.subr.mxu0 0.0
    %66 = vmatpush1.msra.mxu0 0.0
    %67 = vmatprep.subr.mxu0 0.0
    %68 = vmatpush1.msra.mxu0 0.0
    %69 = vmatprep.subr.mxu0 0.0
    %70 = vmatpush1.msra.mxu0 0.0
    %71 = vmatprep.subr.mxu0 0.0
    %72 = vmatpush1.msra.mxu0 0.0
    %73 = vmatprep.subr.mxu0 0.0
    %74 = vmatpush1.msra.mxu0 0.0
    %75 = vmatprep.subr.mxu0 0.0
    %76 = vmatpush1.msra.mxu0 0.0
    %77 = vmatprep.subr.mxu0 0.0
    %78 = vmatpush1.msra.mxu0 0.0
    %79 = vmatprep.subr.mxu0 0.0
    %80 = vmatpush1.msra.mxu0 0.0
    %81 = vmatprep.subr.mxu0 0.0
    %82 = vmatpush1.msra.mxu0 0.0
    %83 = vmatprep.subr.mxu0 0.0
    %84 = vmatpush1.msra.mxu0 0.0
    %85 = vmatprep.subr.mxu0 0.0
    %86 = vmatpush1.msra.mxu0 0.0
    %87 = vmatprep.subr.mxu0 0.0
    %88 = vmatpush1.msra.mxu0 0.0
    %89 = vmatprep.subr.mxu0 0.0
    %90 = vmatpush1.msra.mxu0 0.0
    %91 = vmatprep.subr.mxu0 0.0
    %92 = vmatpush1.msra.mxu0 0.0
    %93 = vmatprep.subr.mxu0 0.0
    %94 = vmatpush1.msra.mxu0 0.0
    %95 = vmatprep.subr.mxu0 0.0
    %96 = vmatpush1.msra.mxu0 0.0
    %97 = vmatprep.subr.mxu0 0.0
    %98 = vmatpush1.msra.mxu0 0.0
    %99 = vmatprep.subr.mxu0 0.0
    %100 = vmatpush1.msra.mxu0 0.0
    %101 = vmatprep.subr.mxu0 0.0
    %102 = vmatpush1.msra.mxu0 0.0
    %103 = vmatprep.subr.mxu0 0.0
    %104 = vmatpush1.msra.mxu0 0.0
    %105 = vmatprep.subr.mxu0 0.0
    %106 = vmatpush1.msra.mxu0 0.0
    %107 = vmatprep.subr.mxu0 0.0
    %108 = vmatpush1.msra.mxu0 0.0
    %109 = vmatprep.subr.mxu0 0.0
    %110 = vmatpush1.msra.mxu0 0.0
    %111 = vmatprep.subr.mxu0 0.0
    %112 = vmatpush1.msra.mxu0 0.0
    %113 = vmatprep.subr.mxu0 0.0
    %114 = vmatpush1.msra.mxu0 0.0
    %115 = vmatprep.subr.mxu0 0.0
    %116 = vmatpush1.msra.mxu0 0.0
    %117 = vmatprep.mubr.f32.mxu0 0.0
    %118 = vmatmul.mubr.f32.gmra.mrb[0].mxu0 %v47
    %v119 = vpop.f32.mrb[0].mxu0
    %v120 = vadd.f32 %v43, %v119
    %v121 = vpop.f32.mrb[0].mxu0
    %122 = vdwg.mxu0
    %v123 = vlaneseq
    %v124 = vand.u32 %v123, 127
    %vm125 = vcmp.eq.s32.totalorder %v124, 32
    %v126 = vmax.f32 %v120, -1.0
    %v127 = vmin.f32 %v126, 1.0
    %v128 = vsel %vm125, 1, 0
    %vm129 = vcmp.eq.s32.totalorder %v128, 1
    %v130 = vsel %vm129, %v127, %v120
    %v131 = vtanh.pop %v130
    %v132 = vld [vmem:[#allocation2] sm:$0xff]
    %v133 = vld [vmem:[#allocation2 + $0x8] sm:$0xff]
    %v134 = vld [vmem:[#allocation2 + $0x10] sm:$0xff]
    %v135 = vld [vmem:[#allocation2 + $0x18] sm:$0xff]
    %v136 = vld [vmem:[#allocation2 + $0x20] sm:$0xff]
    %v137 = vld [vmem:[#allocation2 + $0x28] sm:$0xff]
    %v138 = vld [vmem:[#allocation2 + $0x30] sm:$0xff]
    %v139 = vld [vmem:[#allocation2 + $0x38] sm:$0xff]
    %v140 = vld [vmem:[#allocation2 + $0x40] sm:$0xff]
    %v141 = vld [vmem:[#allocation2 + $0x48] sm:$0xff]
    %v142 = vld [vmem:[#allocation2 + $0x50] sm:$0xff]
    %v143 = vld [vmem:[#allocation2 + $0x58] sm:$0xff]
    %v144 = vld [vmem:[#allocation2 + $0x60] sm:$0xff]
    %v145 = vld [vmem:[#allocation2 + $0x68] sm:$0xff]
    %v146 = vld [vmem:[#allocation2 + $0x70] sm:$0xff]
    %v147 = vld [vmem:[#allocation2 + $0x78] sm:$0xff]
    %v148 = vld [vmem:[%s4] sm:$0x1]
    %v150 = vlaneseq
    %v151 = vshrl.u32 %v150, 7
    %v152 = vsub.s32 0, %v151
    %v153 = vrot.slane %v148, %v152
    %155 = vmatprep.subr.mxu0 0.0
    %156 = vmatpush1.msra.mxu0 %v132
    %157 = vmatprep.subr.mxu0 0.0
    %158 = vmatpush1.msra.mxu0 %v133
    %159 = vmatprep.subr.mxu0 0.0
    %160 = vmatpush1.msra.mxu0 %v134
    %161 = vmatprep.subr.mxu0 0.0
    %162 = vmatpush1.msra.mxu0 %v135
    %163 = vmatprep.subr.mxu0 0.0
    %164 = vmatpush1.msra.mxu0 %v136
    %165 = vmatprep.subr.mxu0 0.0
    %166 = vmatpush1.msra.mxu0 %v137
    %167 = vmatprep.subr.mxu0 0.0
    %168 = vmatpush1.msra.mxu0 %v138
    %169 = vmatprep.subr.mxu0 0.0
    %170 = vmatpush1.msra.mxu0 %v139
    %171 = vmatprep.subr.mxu0 0.0
    %172 = vmatpush1.msra.mxu0 %v140
    %173 = vmatprep.subr.mxu0 0.0
    %174 = vmatpush1.msra.mxu0 %v141
    %175 = vmatprep.subr.mxu0 0.0
    %176 = vmatpush1.msra.mxu0 %v142
    %177 = vmatprep.subr.mxu0 0.0
    %178 = vmatpush1.msra.mxu0 %v143
    %179 = vmatprep.subr.mxu0 0.0
    %180 = vmatpush1.msra.mxu0 %v144
    %181 = vmatprep.subr.mxu0 0.0
    %182 = vmatpush1.msra.mxu0 %v145
    %183 = vmatprep.subr.mxu0 0.0
    %184 = vmatpush1.msra.mxu0 %v146
    %185 = vmatprep.subr.mxu0 0.0
    %186 = vmatpush1.msra.mxu0 %v147
    %187 = vmatprep.subr.mxu0 0.0
    %188 = vmatpush1.msra.mxu0 0.0
    %189 = vmatprep.subr.mxu0 0.0
    %190 = vmatpush1.msra.mxu0 0.0
    %191 = vmatprep.subr.mxu0 0.0
    %192 = vmatpush1.msra.mxu0 0.0
    %193 = vmatprep.subr.mxu0 0.0
    %194 = vmatpush1.msra.mxu0 0.0
    %195 = vmatprep.subr.mxu0 0.0
    %196 = vmatpush1.msra.mxu0 0.0
    %197 = vmatprep.subr.mxu0 0.0
    %198 = vmatpush1.msra.mxu0 0.0
    %199 = vmatprep.subr.mxu0 0.0
    %200 = vmatpush1.msra.mxu0 0.0
    %201 = vmatprep.subr.mxu0 0.0
    %202 = vmatpush1.msra.mxu0 0.0
    %203 = vmatprep.subr.mxu0 0.0
    %204 = vmatpush1.msra.mxu0 0.0
    %205 = vmatprep.subr.mxu0 0.0
    %206 = vmatpush1.msra.mxu0 0.0
    %207 = vmatprep.subr.mxu0 0.0
    %208 = vmatpush1.msra.mxu0 0.0
    %209 = vmatprep.subr.mxu0 0.0
    %210 = vmatpush1.msra.mxu0 0.0
    %211 = vmatprep.subr.mxu0 0.0
    %212 = vmatpush1.msra.mxu0 0.0
    %213 = vmatprep.subr.mxu0 0.0
    %214 = vmatpush1.msra.mxu0 0.0
    %215 = vmatprep.subr.mxu0 0.0
    %216 = vmatpush1.msra.mxu0 0.0
    %217 = vmatprep.subr.mxu0 0.0
    %218 = vmatpush1.msra.mxu0 0.0
    %219 = vmatprep.mubr.f32.mxu0 0.0
    %220 = vmatmul.mubr.f32.gmra.mrb[0].mxu0 %v131
    %v221 = vpop.f32.mrb[0].mxu0
    %v222 = vadd.f32 %v153, %v221
    %v223 = vpop.f32.mrb[0].mxu0
    %224 = vdwg.mxu0
    %v225 = vtanh.pop %v222
    %vm226 = vcmp.eq.s32.totalorder %v124, 2
    %v227 = vsel %vm226, 1, 0
    %vm228 = vcmp.eq.s32.totalorder %v227, 1
    %230 = vset.pattern.permute.xlu0 32
    %231 = vperm.xlu0 %230, %v131
    %v232 = vpop.permute.xlu0 %231
    %v234 = vsel %vm228, %v232, %v225
    %vm235 = vcmask 64512
    %236 = vst.msk [vmem:[%s5] sm:$0xff] %vm235, %v234
    // Predicated region
    $region26: #{forward.1} parent=1 // pred_check
      _
    $region27: #{forward.1} parent=1 // pred_check_branch
      %238 = sbr.rel (0) target = $region29
    $region28: #{forward.1} parent=1 // pred_region
      _
    $region29: #{forward.1} parent=1 // pred_fallthru
      _
    // Predicated region
    $region30: #{forward.1} parent=1 // pred_check
      _
    $region31: #{forward.1} parent=1 // pred_check_branch
      %240 = sbr.rel (0) target = $region33
    $region32: #{forward.1} parent=1 // pred_region
      _
    $region33: #{forward.1} parent=1 // pred_fallthru
      _
    %241 = vsyncpa [#allocation3], 1

</llo_original>
